<compile_context>
chip_gen: v5e
topology: v5e:2x2
jax: 0.10.0
libtpu: 0.0.40
codegen_flags: <defaults>
</compile_context>

<pallas_src>
import functools

import jax
import jax.numpy as jnp
import numpy as np
from jax import lax
from jax.experimental import pallas as pl
from jax.experimental.pallas import tpu as pltpu

_LANES = 128
_SMALL_N = 1 << 16   # below this a standalone pallas_call is pure launch overhead


def _round_up(x: int, m: int) -> int:
    return (x + m - 1) // m * m


def _device_defaults():
    """(max_tile_rows, num_chunks) tuned per TPU generation, safe fallbacks."""
    max_tile_rows, num_chunks = 4096, 1          # safe everywhere (incl. v5e)
    try:
        kind = jax.devices()[0].device_kind.lower()
        if "v6" in kind or "v7" in kind or "7x" in kind:
            max_tile_rows = 8192                 # >=32 MiB scoped VMEM, fast HBM
        if "v7" in kind or "7x" in kind:
            num_chunks = 2                       # two TensorCores per chip
    except Exception:
        pass
    return max_tile_rows, num_chunks


def _partial_sse_kernel(x_ref, t_ref, out_ref, acc_ref, *, rows_total, needs_mask):
    """Grid step (chunk c, tile t): accumulate this chunk's per-lane SSE.

    x_ref, t_ref : VMEM (tile_rows, 128) tiles (f32 or bf16; cast to f32 here)
    out_ref      : VMEM (1, 1, 128) per-chunk partial-SSE output block
    acc_ref      : VMEM (1, 128) running per-lane SSE for the current chunk
    """
    c = pl.program_id(0)
    t = pl.program_id(1)

    @pl.when(t == 0)
    def _init():
        acc_ref[...] = jnp.zeros_like(acc_ref)

    diff = x_ref[...].astype(jnp.float32) - t_ref[...].astype(jnp.float32)
    sq = diff * diff
    if needs_mask:
        # Zero rows past the end of the (rows_total, 128) body view; this also
        # neutralizes duplicated tiles produced by the clamped index_map.
        tile_rows = x_ref.shape[0]
        row0 = (c * pl.num_programs(1) + t) * tile_rows
        row_idx = row0 + lax.broadcasted_iota(jnp.int32, sq.shape, 0)
        sq = jnp.where(row_idx < rows_total, sq, 0.0)
    acc_ref[...] += jnp.sum(sq, axis=0, keepdims=True)

    @pl.when(t == pl.num_programs(1) - 1)
    def _write():
        out_ref[0] = acc_ref[...]


def elbo_forward(inp, target, kl, beta, train_size, *,
                 max_tile_rows=None, num_chunks=None, force_pallas=False):
    """JAX wrapper reproducing ELBO.forward semantics."""
    def as_stream_dtype(x):
        x = jnp.asarray(x)
        return x if x.dtype in (jnp.float32, jnp.bfloat16) else x.astype(jnp.float32)

    inp = as_stream_dtype(inp)
    target = as_stream_dtype(target)                       # target.float()
    if target.ndim != inp.ndim:                            # target.unsqueeze(1)
        target = target[:, None]
    assert inp.shape == target.shape

    n_elems = int(np.prod(inp.shape))
    rows = n_elems // _LANES                               # full 128-lane rows
    rem = n_elems - rows * _LANES

    kl = jnp.asarray(kl, jnp.float32)
    beta = jnp.asarray(beta, jnp.float32)
    # train_size may be a Python number or a traced scalar; both work (no
    # static bake-in, so no Mosaic recompile per train_size).
    scale = jnp.asarray(train_size, jnp.float32) / jnp.float32(n_elems)

    def epilogue(sse):
        return sse * scale + beta * kl

    # Small-input fast path (typical (B, 1) regression-head batches).
    if rows == 0 or (not force_pallas and n_elems < _SMALL_N):
        diff = inp.astype(jnp.float32) - target.astype(jnp.float32)
        return epilogue(jnp.sum(diff * diff))

    dflt_tile_rows, dflt_chunks = _device_defaults()
    if max_tile_rows is None:
        max_tile_rows = dflt_tile_rows
    if num_chunks is None:
        num_chunks = dflt_chunks

    gran = 16 if (inp.dtype == jnp.bfloat16 or target.dtype == jnp.bfloat16) else 8
    max_tile_rows = max(_round_up(int(max_tile_rows), gran), gran)

    x_flat = inp.reshape(-1)
    t_flat = target.reshape(-1)

    # Ragged tail (< 128 elements): tiny f32 correction computed in plain JAX
    # so the kernel never needs a padded copy of the inputs.
    if rem:
        tail_x = x_flat[rows * _LANES:].astype(jnp.float32)
        tail_t = t_flat[rows * _LANES:].astype(jnp.float32)
        tail_sse = jnp.sum((tail_x - tail_t) ** 2)
        x_body = x_flat[:rows * _LANES]
        t_body = t_flat[:rows * _LANES]
    else:
        tail_sse = jnp.float32(0.0)
        x_body = x_flat                                    # no pad, no copy
        t_body = t_flat

    x_body = x_body.reshape(rows, _LANES)
    t_body = t_body.reshape(rows, _LANES)

    tile_rows = min(max_tile_rows, _round_up(pl.cdiv(rows, num_chunks), gran))
    num_tiles = pl.cdiv(rows, tile_rows)
    num_chunks = max(1, min(int(num_chunks), num_tiles))
    tiles_per_chunk = pl.cdiv(num_tiles, num_chunks)
    needs_mask = (rows % tile_rows != 0) or (num_chunks * tiles_per_chunk != num_tiles)

    def in_map(c, t):
        # Clamp so the (possibly padded) logical tile grid never indexes past
        # the array; the in-kernel row mask zeroes any duplicated tile.
        return (jnp.minimum(c * tiles_per_chunk + t, num_tiles - 1), 0)

    kernel = functools.partial(_partial_sse_kernel, rows_total=rows,
                               needs_mask=needs_mask)

    partials = pl.pallas_call(
        kernel,
        out_shape=jax.ShapeDtypeStruct((num_chunks, 1, _LANES), jnp.float32),
        grid=(num_chunks, tiles_per_chunk),
        in_specs=[
            pl.BlockSpec((tile_rows, _LANES), in_map),     # input
            pl.BlockSpec((tile_rows, _LANES), in_map),     # target
        ],
        out_specs=pl.BlockSpec((1, 1, _LANES), lambda c, t: (c, 0, 0)),
        scratch_shapes=[pltpu.VMEM((1, _LANES), jnp.float32)],
        compiler_params=pltpu.CompilerParams(
            dimension_semantics=("parallel", "arbitrary")),
    )(x_body, t_body)

    return epilogue(jnp.sum(partials) + tail_sse)


def _reference(inp, target, kl, beta, train_size):
    inp = jnp.asarray(inp, jnp.float32)
    target = jnp.asarray(target, jnp.float32)
    if target.ndim != inp.ndim:
        target = target[:, None]
    return jnp.mean((inp - target) ** 2) * train_size + beta * kl


if __name__ == "__main__":
    key = jax.random.PRNGKey(0)
    k1, k2, k3, k4, k5, k6, k7 = jax.random.split(key, 7)

    train_size = 88                                       # int(100 * 0.88)
    kl = jnp.abs(jax.random.normal(k1, (), dtype=jnp.float32))
    beta = jnp.float32(0.1)
    ok = True

    # Case 1: production-like regression head (B,1) vs (B,) (unsqueeze path).
    # Tiny -> handled by the pure-JAX fast path.
    inp_a = jax.random.normal(k2, (8, 1), dtype=jnp.float32)
    tgt_a = jax.random.normal(k3, (8,), dtype=jnp.float32)
    out_a = jax.block_until_ready(elbo_forward(inp_a, tgt_a, kl, beta, train_size))
    ref_a = _reference(inp_a, tgt_a, kl, beta, train_size)
    ok &= bool(np.allclose(np.asarray(out_a), np.asarray(ref_a), rtol=1e-5, atol=1e-5))

    # Case 2: ragged element count (257*33 = 66*128 + 33), forced through the
    # kernel with small tiles + 2 chunks to exercise the masked last tile, the
    # clamped chunk index_map and the JAX tail correction.
    inp_b = jax.random.normal(k4, (257, 33), dtype=jnp.float32)
    tgt_b = jax.random.normal(k5, (257, 33), dtype=jnp.float32)
    out_b = jax.block_until_ready(
        elbo_forward(inp_b, tgt_b, kl, beta, train_size,
                     max_tile_rows=32, num_chunks=2, force_pallas=True))
    ref_b = _reference(inp_b, tgt_b, kl, beta, train_size)
    ok &= bool(np.allclose(np.asarray(out_b), np.asarray(ref_b), rtol=1e-5, atol=1e-4))

    # Case 3: lane-aligned bf16 activations (no pad, no copy, bf16 streaming,
    # big-tile single/multi-step path with device-derived defaults).
    inp_c = jax.random.normal(k6, (8, 16, 64, 64), dtype=jnp.bfloat16)
    tgt_c = jax.random.normal(k7, (8, 16, 64, 64), dtype=jnp.bfloat16)
    out_c = jax.block_until_ready(elbo_forward(inp_c, tgt_c, kl, beta, train_size))
    ref_c = _reference(inp_c, tgt_c, kl, beta, train_size)
    ok &= bool(np.allclose(np.asarray(out_c), np.asarray(ref_c), rtol=1e-4, atol=1e-3))

    assert ok
    print("KERNEL_OK")
</pallas_src>

<mosaic_0001>
module attributes {stable_mosaic.version = 11 : i64} {
  func.func @_partial_sse_kernel(%arg0: i32, %arg1: i32, %arg2: memref<32x128xf32, #tpu.memory_space<vmem>>, %arg3: memref<32x128xf32, #tpu.memory_space<vmem>>, %arg4: memref<1x1x128xf32, #tpu.memory_space<vmem>>, %arg5: memref<1x128xf32, #tpu.memory_space<vmem>>) attributes {dimension_semantics = [#tpu.dimension_semantics<parallel>, #tpu.dimension_semantics<arbitrary>], iteration_bounds = array<i64: 2, 2>, scalar_prefetch = 0 : i64, scratch_operands = 1 : i64, tpu.core_type = #tpu.core_type<tc>, window_params = [{transform_indices = @transform_0, window_bounds = array<i64: 32, 128>}, {transform_indices = @transform_1, window_bounds = array<i64: 32, 128>}, {transform_indices = @transform_2, window_bounds = array<i64: 1, 1, 128>}]} {
    %c0_i32 = arith.constant 0 : i32
    %0 = arith.cmpi eq, %arg1, %c0_i32 : i32
    %1 = arith.extui %0 : i1 to i32
    %c0_i32_0 = arith.constant 0 : i32
    %2 = arith.cmpi ne, %1, %c0_i32_0 : i32
    scf.if %2 {
      %cst_10 = arith.constant 0.000000e+00 : f32
      %25 = vector.broadcast %cst_10 : f32 to vector<1x128xf32>
      %c0_11 = arith.constant 0 : index
      %c0_12 = arith.constant 0 : index
      %26 = vector.load %arg5[%c0_11, %c0_12] : memref<1x128xf32, #tpu.memory_space<vmem>>, vector<1x128xf32>
      tpu.vector_store %arg5[%c0_11, %c0_12], %25 {strides = array<i32>} : memref<1x128xf32, #tpu.memory_space<vmem>>, vector<1x128xf32>,
    } else {
    }
    %c0 = arith.constant 0 : index
    %c0_1 = arith.constant 0 : index
    %3 = vector.load %arg2[%c0, %c0_1] : memref<32x128xf32, #tpu.memory_space<vmem>>, vector<32x128xf32>
    %c0_2 = arith.constant 0 : index
    %c0_3 = arith.constant 0 : index
    %4 = vector.load %arg3[%c0_2, %c0_3] : memref<32x128xf32, #tpu.memory_space<vmem>>, vector<32x128xf32>
    %5 = arith.subf %3, %4 : vector<32x128xf32>
    %6 = arith.mulf %5, %5 : vector<32x128xf32>
    %c2_i32 = arith.constant 2 : i32
    %7 = arith.muli %arg0, %c2_i32 : i32
    %8 = arith.addi %7, %arg1 : i32
    %c32_i32 = arith.constant 32 : i32
    %9 = arith.muli %8, %c32_i32 : i32
    %10 = tpu.iota {dimensions = array<i32: 0>} : vector<32x128xi32>
    %11 = vector.broadcast %9 : i32 to vector<32x128xi32>
    %12 = arith.addi %11, %10 : vector<32x128xi32>
    %c66_i32 = arith.constant 66 : i32
    %13 = vector.broadcast %c66_i32 : i32 to vector<32x128xi32>
    %14 = arith.cmpi slt, %12, %13 : vector<32x128xi32>
    %cst = arith.constant 0.000000e+00 : f32
    %15 = vector.broadcast %cst : f32 to vector<32x128xf32>
    %16 = arith.select %14, %6, %15 : vector<32x128xi1>, vector<32x128xf32>
    %c0_4 = arith.constant 0 : index
    %c0_5 = arith.constant 0 : index
    %17 = vector.load %arg5[%c0_4, %c0_5] : memref<1x128xf32, #tpu.memory_space<vmem>>, vector<1x128xf32>
    %cst_6 = arith.constant dense<0.000000e+00> : vector<128xf32>
    %18 = vector.multi_reduction <add>, %16, %cst_6 [0] : vector<32x128xf32> to vector<128xf32>
    %19 = vector.shape_cast %18 : vector<128xf32> to vector<1x128xf32>
    %20 = arith.addf %17, %19 : vector<1x128xf32>
    %c0_7 = arith.constant 0 : index
    %c0_8 = arith.constant 0 : index
    %21 = vector.load %arg5[%c0_7, %c0_8] : memref<1x128xf32, #tpu.memory_space<vmem>>, vector<1x128xf32>
    tpu.vector_store %arg5[%c0_7, %c0_8], %20 {strides = array<i32>} : memref<1x128xf32, #tpu.memory_space<vmem>>, vector<1x128xf32>,
    %c1_i32 = arith.constant 1 : i32
    %22 = arith.cmpi eq, %arg1, %c1_i32 : i32
    %23 = arith.extui %22 : i1 to i32
    %c0_i32_9 = arith.constant 0 : i32
    %24 = arith.cmpi ne, %23, %c0_i32_9 : i32
    scf.if %24 {
      %c0_10 = arith.constant 0 : index
      %c0_11 = arith.constant 0 : index
      %25 = vector.load %arg5[%c0_10, %c0_11] : memref<1x128xf32, #tpu.memory_space<vmem>>, vector<1x128xf32>
      %c0_12 = arith.constant 0 : index
      %c0_13 = arith.constant 0 : index
      %c0_14 = arith.constant 0 : index
      %26 = vector.load %arg4[%c0_12, %c0_13, %c0_14] : memref<1x1x128xf32, #tpu.memory_space<vmem>>, vector<1x1x128xf32>
      %27 = vector.shape_cast %26 : vector<1x1x128xf32> to vector<1x128xf32>
      %28 = vector.shape_cast %25 : vector<1x128xf32> to vector<1x1x128xf32>
      tpu.vector_store %arg4[%c0_12, %c0_13, %c0_14], %28 {strides = array<i32>} : memref<1x1x128xf32, #tpu.memory_space<vmem>>, vector<1x1x128xf32>,
    } else {
    }
    return
  }
  func.func @transform_0(%arg0: i32, %arg1: i32) -> (i32, i32) {
    %c2_i32 = arith.constant 2 : i32
    %0 = arith.muli %arg0, %c2_i32 : i32
    %1 = arith.addi %0, %arg1 : i32
    %c2_i32_0 = arith.constant 2 : i32
    %2 = arith.minsi %1, %c2_i32_0 : i32
    %c0_i32 = arith.constant 0 : i32
    %c0_i32_1 = arith.constant 0 : i32
    return %2, %c0_i32 : i32, i32
  }
  func.func @transform_1(%arg0: i32, %arg1: i32) -> (i32, i32) {
    %c2_i32 = arith.constant 2 : i32
    %0 = arith.muli %arg0, %c2_i32 : i32
    %1 = arith.addi %0, %arg1 : i32
    %c2_i32_0 = arith.constant 2 : i32
    %2 = arith.minsi %1, %c2_i32_0 : i32
    %c0_i32 = arith.constant 0 : i32
    %c0_i32_1 = arith.constant 0 : i32
    return %2, %c0_i32 : i32, i32
  }
  func.func @transform_2(%arg0: i32, %arg1: i32) -> (i32, i32, i32) {
    %c0_i32 = arith.constant 0 : i32
    %c0_i32_0 = arith.constant 0 : i32
    %c0_i32_1 = arith.constant 0 : i32
    return %arg0, %c0_i32, %c0_i32_0 : i32, i32, i32
  }
}

</mosaic_0001>

<llo_original>
// kernel: tpu_custom_call.1
$region0: #{tpu_custom_call.1}
  #allocation0 [shape = 'u32[]', space=smem, size = 0x4, offset = 0x4, fixed_abs, tag = 'smem constant byte address 0x4 - core index']
  #allocation1 [shape = 'u32[72,128]{1,0:T(1,128)}', space=vmem, size = 0x9000, scoped, tag = 'internal scratch']
  #allocation2 [shape = 'f32[1,128]{1,0:T(1,128)}', space=vmem, size = 0x200, scoped, tag = 'scratch operand']
  %s0 = inlined_call_operand.hbm [shape: f32[66,128], index: 0, kind: input, shape index: {}]
  %s1 = inlined_call_operand.hbm [shape: f32[66,128], index: 1, kind: input, shape index: {}]
  %s2 = inlined_call_operand.hbm [shape: f32[2,1,128], index: 2, kind: output, shape index: {}]
  %s3 = sld [smem:[#allocation0]]
  $region57: #{tpu_custom_call.1} parent=0
    _
  %s5 = ssub.s32 1, %s3
  %s6 = scalar_select 0, %s5, %s3
  $region1: #{tpu_custom_call.1} parent=0
    #allocation3 [shape = 'u8[32768]{0}', space=vmem, size = 0x8000, scoped, tag = 'input window, operand 0']
    #allocation4 [shape = 's32[2]{0}', space=sflag, size = 0x8, scoped, tag = 'scoped memory for tpu_custom_call.1']
    #allocation5 [shape = 's32[2]{0}', space=sflag, size = 0x8, scoped, tag = 'scoped memory for tpu_custom_call.1']
    #allocation6 [shape = 'u8[32768]{0}', space=vmem, size = 0x8000, scoped, tag = 'input window, operand 1']
    #allocation7 [shape = 's32[2]{0}', space=sflag, size = 0x8, scoped, tag = 'scoped memory for tpu_custom_call.1']
    #allocation8 [shape = 'u8[1024]{0}', space=vmem, size = 0x400, scoped, tag = 'output window, operand 0']
    %7 = vsyncpa [#allocation4], 0
    %s8 = scalar_lea.sflag [#allocation4], 1
    %9 = vsyncpa %s8, 0
    %10 = vsyncpa [#allocation7], 0
    %s11 = scalar_lea.sflag [#allocation7], 1
    %12 = vsyncpa %s11, 0
    %13 = vsyncpa [#allocation5], 0
    %s14 = scalar_lea.sflag [#allocation5], 1
    %15 = vsyncpa %s14, 0
    loop: start=0, step=1, limit=6
    $region2: #{tpu_custom_call.1} parent=1 // loop_pre_header
      _
    $region3: #{tpu_custom_call.1} parent=1 // loop_header
      %s17 = sphi 0, %s21
      %p18 = scmp.ge.s32.totalorder %s17, 6
      %s24 = sphi 0, %s36
      %s25 = sphi 0, %s32
      %s26 = sphi 0, %s24
      %s27 = sphi 0, %s25
      %s28 = sphi 0, %s26
      %s29 = sphi 0, %s27
      %s47 = sphi 0, %s49
      %s50 = sphi 0, %s47
      %s51 = sphi 0, %s50
      %s67 = sphi 0, %s51
      %s81 = sphi 0, %s83
      %s84 = sphi 0, %s81
      %s85 = sphi 0, %s84
      %s101 = sphi 0, %s85
      %s107 = sphi 0, %s109
      %s110 = sphi 0, %s107
      %s111 = sphi 0, %s110
      %s127 = sphi 0, %s111
    $region4: #{tpu_custom_call.1} parent=1 // loop_header_branch
      %20 = sbr.rel (%p18) target = $region8
    $region5: #{tpu_custom_call.1} parent=1 // loop_body
      %s22 = ssub.s32 %s17, 1
      %s23 = ssub.s32 %s17, 2
      %s30 = sadd.s32 1, %s25
      %p31 = scmp.ge.s32.totalorder %s30, 2
      %s32 = scalar_select %p31, 0, %s30
      %s33 = sadd.s32 1, %s24
      %s34 = scalar_select %p31, %s33, %s24
      %p35 = scmp.ge.s32.totalorder %s34, 2
      %s36 = scalar_select %p35, 0, %s34
      %s37 = smul.u32 %s24, 2
      %s38 = sadd.s32 %s37, %s25
      %p39 = scmp.lt.s32.totalorder %s38, 2
      %s40 = scalar_select %p39, %s38, 2
      %s41 = smul.u32 %s36, 2
      %s42 = sadd.s32 %s41, %s32
      %p43 = scmp.lt.s32.totalorder %s42, 2
      %s44 = scalar_select %p43, %s42, 2
      %s45 = ssub.s32 %s40, %s44
      %p46 = scmp.eq.s32.totalorder %s45, 0
      %s48 = sadd.s32 %s47, 1
      %s49 = scalar_select %p46, %s47, %s48
      %p52 = pneg %p46
      %p53 = scmp.eq.s32.totalorder %s17, 3
      %p54 = por %p52, %p53
      %p55 = scmp.ne.s32.totalorder %s47, %s50
      %p56 = scmp.eq.s32.totalorder %s17, 0
      %p57 = por %p55, %p56
      %p58 = scmp.ne.s32.totalorder %s47, %s50
      %p59 = scmp.eq.s32.totalorder %s22, 3
      %p60 = por %p58, %p59
      %p61 = scmp.ne.s32.totalorder %s50, %s51
      %p62 = scmp.eq.s32.totalorder %s22, 0
      %p63 = por %p61, %p62
      %p64 = scmp.ne.s32.totalorder %s50, %s51
      %p65 = scmp.eq.s32.totalorder %s23, 3
      %p66 = por %p64, %p65
      %p68 = scmp.ne.s32.totalorder %s51, %s67
      %p69 = scmp.eq.s32.totalorder %s23, 0
      %p70 = por %p68, %p69
      %s71 = smul.u32 %s24, 2
      %s72 = sadd.s32 %s71, %s25
      %p73 = scmp.lt.s32.totalorder %s72, 2
      %s74 = scalar_select %p73, %s72, 2
      %s75 = smul.u32 %s36, 2
      %s76 = sadd.s32 %s75, %s32
      %p77 = scmp.lt.s32.totalorder %s76, 2
      %s78 = scalar_select %p77, %s76, 2
      %s79 = ssub.s32 %s74, %s78
      %p80 = scmp.eq.s32.totalorder %s79, 0
      %s82 = sadd.s32 %s81, 1
      %s83 = scalar_select %p80, %s81, %s82
      %p86 = pneg %p80
      %p87 = scmp.eq.s32.totalorder %s17, 3
      %p88 = por %p86, %p87
      %p89 = scmp.ne.s32.totalorder %s81, %s84
      %p90 = scmp.eq.s32.totalorder %s17, 0
      %p91 = por %p89, %p90
      %p92 = scmp.ne.s32.totalorder %s81, %s84
      %p93 = scmp.eq.s32.totalorder %s22, 3
      %p94 = por %p92, %p93
      %p95 = scmp.ne.s32.totalorder %s84, %s85
      %p96 = scmp.eq.s32.totalorder %s22, 0
      %p97 = por %p95, %p96
      %p98 = scmp.ne.s32.totalorder %s84, %s85
      %p99 = scmp.eq.s32.totalorder %s23, 3
      %p100 = por %p98, %p99
      %p102 = scmp.ne.s32.totalorder %s85, %s101
      %p103 = scmp.eq.s32.totalorder %s23, 0
      %p104 = por %p102, %p103
      %s105 = ssub.s32 %s24, %s36
      %p106 = scmp.eq.s32.totalorder %s105, 0
      %s108 = sadd.s32 %s107, 1
      %s109 = scalar_select %p106, %s107, %s108
      %p112 = pneg %p106
      %p113 = scmp.eq.s32.totalorder %s17, 3
      %p114 = por %p112, %p113
      %p115 = scmp.ne.s32.totalorder %s107, %s110
      %p116 = scmp.eq.s32.totalorder %s17, 0
      %p117 = por %p115, %p116
      %p118 = scmp.ne.s32.totalorder %s107, %s110
      %p119 = scmp.eq.s32.totalorder %s22, 3
      %p120 = por %p118, %p119
      %p121 = scmp.ne.s32.totalorder %s110, %s111
      %p122 = scmp.eq.s32.totalorder %s22, 0
      %p123 = por %p121, %p122
      %p124 = scmp.ne.s32.totalorder %s110, %s111
      %p125 = scmp.eq.s32.totalorder %s23, 3
      %p126 = por %p124, %p125
      %p128 = scmp.ne.s32.totalorder %s111, %s127
      %p129 = scmp.eq.s32.totalorder %s23, 0
      %p130 = por %p128, %p129
      %p131 = scmp.le.s32.totalorder 1, %s17
      %p132 = scmp.lt.s32.totalorder %s17, 5
      %p133 = pnand %p131, %p132
      %p134 = pneg %p133
      // Predicated region
      $region9: #{tpu_custom_call.1} parent=5 // pred_check
        _
      $region10: #{tpu_custom_call.1} parent=5 // pred_check_branch
        %136 = sbr.rel (%p133) target = $region12
      $region11: #{tpu_custom_call.1} parent=5 // pred_region
        %s137 = ssub.s32 %s17, 1
      $region12: #{tpu_custom_call.1} parent=5 // pred_fallthru
        _
      %p138 = scmp.lt.s32.totalorder %s17, 4
      // Predicated region
      $region13: #{tpu_custom_call.1} parent=5 // pred_check
        %p139 = pneg %p138
      $region14: #{tpu_custom_call.1} parent=5 // pred_check_branch
        %141 = sbr.rel (%p139) target = $region16
      $region15: #{tpu_custom_call.1} parent=5 // pred_region
        // Predicated region
        $region17: #{tpu_custom_call.1} parent=15 // pred_check
          %p142 = pneg %p57
        $region18: #{tpu_custom_call.1} parent=15 // pred_check_branch
          %144 = sbr.rel (%p142) target = $region20
        $region19: #{tpu_custom_call.1} parent=15 // pred_region
          %s145 = sand.u32 %s47, 1
          %s146 = scalar_lea.sflag [#allocation4], %s145
          %s147 = sand.u32 %s47, 1
          %s148 = smul.addr %s147, 32
          %s149 = scalar_lea.vmem [#allocation3], %s148
          %s150 = smul.u32 %s24, 2
          %s151 = sadd.s32 %s150, %s25
          %p152 = scmp.lt.s32.totalorder %s151, 2
          %s153 = scalar_select %p152, %s151, 2
          %s154 = smul.u32 4, %s153
          %s155 = ssub.s32 9, %s154
          %p156 = scmp.lt.s32.totalorder %s155, 4
          %s157 = scalar_select %p156, %s155, 4
          %s158 = smul.u32 8, %s157
          %s159 = ssub.s32 32, %s158
          %s160 = sshll.u32 %s159, 4
          %161 = vsyncadd %s146, %s160
          %p162 = scmp.ne.s32.totalorder 0, %s158
          %s163 = smul.addr %s154, 8
          %s164 = scalar_lea.hbm %s0, %s163
          %s165 = smul.u32 8, %s157
          %s166 = sshll.u32 %s164, 4
          %s167 = int_to_ptr.hbm [resolvable:$true] %s166
          %s168 = sshll.u32 %s149, 4
          %s169 = int_to_ptr.vmem [resolvable:$true] %s168
          %s170 = sshll.u32 %s165, 4
          %174 = dma.hbm_to_vmem [thread:$0]  (%p162), %s167, %s170, %s169, %s146, 128, 128, 8
        $region20: #{tpu_custom_call.1} parent=15 // pred_fallthru
          _
        // Predicated region
        $region21: #{tpu_custom_call.1} parent=15 // pred_check
          %p175 = pneg %p91
        $region22: #{tpu_custom_call.1} parent=15 // pred_check_branch
          %177 = sbr.rel (%p175) target = $region24
        $region23: #{tpu_custom_call.1} parent=15 // pred_region
          %s178 = sand.u32 %s81, 1
          %s179 = scalar_lea.sflag [#allocation7], %s178
          %s180 = sand.u32 %s81, 1
          %s181 = smul.addr %s180, 32
          %s182 = scalar_lea.vmem [#allocation6], %s181
          %s183 = smul.u32 %s24, 2
          %s184 = sadd.s32 %s183, %s25
          %p185 = scmp.lt.s32.totalorder %s184, 2
          %s186 = scalar_select %p185, %s184, 2
          %s187 = smul.u32 4, %s186
          %s188 = ssub.s32 9, %s187
          %p189 = scmp.lt.s32.totalorder %s188, 4
          %s190 = scalar_select %p189, %s188, 4
          %s191 = smul.u32 8, %s190
          %s192 = ssub.s32 32, %s191
          %s193 = sshll.u32 %s192, 4
          %194 = vsyncadd %s179, %s193
          %p195 = scmp.ne.s32.totalorder 0, %s191
          %s196 = smul.addr %s187, 8
          %s197 = scalar_lea.hbm %s1, %s196
          %s198 = smul.u32 8, %s190
          %s199 = sshll.u32 %s197, 4
          %s200 = int_to_ptr.hbm [resolvable:$true] %s199
          %s201 = sshll.u32 %s182, 4
          %s202 = int_to_ptr.vmem [resolvable:$true] %s201
          %s203 = sshll.u32 %s198, 4
          %207 = dma.hbm_to_vmem [thread:$0]  (%p195), %s200, %s203, %s202, %s179, 128, 128, 8
        $region24: #{tpu_custom_call.1} parent=15 // pred_fallthru
          _
      $region16: #{tpu_custom_call.1} parent=5 // pred_fallthru
        _
      %p208 = scmp.le.s32.totalorder 1, %s17
      %p209 = scmp.lt.s32.totalorder %s17, 5
      %p210 = pnand %p208, %p209
      %p211 = pneg %p210
      // Predicated region
      $region25: #{tpu_custom_call.1} parent=5 // pred_check
        _
      $region26: #{tpu_custom_call.1} parent=5 // pred_check_branch
        %213 = sbr.rel (%p210) target = $region28
      $region27: #{tpu_custom_call.1} parent=5 // pred_region
        %s214 = ssub.s32 %s17, 1
        %s215 = sand.u32 %s50, 1
        %s216 = scalar_lea.sflag [#allocation4], %s215
        %s217 = sand.u32 %s50, 1
        %s218 = smul.addr %s217, 32
        %s219 = scalar_lea.vmem [#allocation3], %s218
        // Predicated region
        $region29: #{tpu_custom_call.1} parent=27 // pred_check
          %p220 = pneg %p63
        $region30: #{tpu_custom_call.1} parent=27 // pred_check_branch
          %222 = sbr.rel (%p220) target = $region32
        $region31: #{tpu_custom_call.1} parent=27 // pred_region
          %224 = dma.done %s216, 512
        $region32: #{tpu_custom_call.1} parent=27 // pred_fallthru
          _
        %s225 = sand.u32 %s84, 1
        %s226 = scalar_lea.sflag [#allocation7], %s225
        %s227 = sand.u32 %s84, 1
        %s228 = smul.addr %s227, 32
        %s229 = scalar_lea.vmem [#allocation6], %s228
        // Predicated region
        $region33: #{tpu_custom_call.1} parent=27 // pred_check
          %p230 = pneg %p97
        $region34: #{tpu_custom_call.1} parent=27 // pred_check_branch
          %232 = sbr.rel (%p230) target = $region36
        $region35: #{tpu_custom_call.1} parent=27 // pred_region
          %234 = dma.done %s226, 512
        $region36: #{tpu_custom_call.1} parent=27 // pred_fallthru
          _
        %s235 = sand.u32 %s50, 1
        %s236 = scalar_lea.sflag [#allocation4], %s235
        %s237 = sand.u32 %s50, 1
        %s238 = smul.addr %s237, 32
        %s239 = scalar_lea.vmem [#allocation3], %s238
        %p240 = pneg %p63
        %p241 = pneg %p60
        %s242 = sand.u32 %s84, 1
        %s243 = scalar_lea.sflag [#allocation7], %s242
        %s244 = sand.u32 %s84, 1
        %s245 = smul.addr %s244, 32
        %s246 = scalar_lea.vmem [#allocation6], %s245
        %p247 = pneg %p97
        %p248 = pneg %p94
        %p249 = pneg %p123
        %p250 = pneg %p120
        %s251 = sand.u32 %s110, 1
        %s252 = scalar_lea.sflag [#allocation5], %s251
        %s253 = sand.u32 %s110, 1
        %s254 = scalar_lea.vmem [#allocation8], %s253
        %s255 = smul.u32 %s26, 2
        %s256 = sadd.s32 %s255, %s27
        %p257 = scmp.lt.s32.totalorder %s256, 2
        %s258 = scalar_select %p257, %s256, 2
        %s259 = smul.u32 4, %s258
        %s260 = ssub.s32 9, %s259
        %p261 = scmp.lt.s32.totalorder %s260, 4
        %s262 = scalar_select %p261, %s260, 4
        %s263 = smul.u32 8, %s262
        %s264 = smul.u32 %s26, 2
        %s265 = sadd.s32 %s264, %s27
        %p266 = scmp.lt.s32.totalorder %s265, 2
        %s267 = scalar_select %p266, %s265, 2
        %s268 = smul.u32 4, %s267
        %s269 = ssub.s32 9, %s268
        %p270 = scmp.lt.s32.totalorder %s269, 4
        %s271 = scalar_select %p270, %s269, 4
        %s272 = smul.u32 8, %s271
        %p273 = scmp.eq.s32.totalorder %s27, 0
        // Predicated region
        $region37: #{tpu_custom_call.1} parent=27 // pred_check
          %p274 = pneg %p273
        $region38: #{tpu_custom_call.1} parent=27 // pred_check_branch
          %276 = sbr.rel (%p274) target = $region40
        $region39: #{tpu_custom_call.1} parent=27 // pred_region
          %277 = vst [vmem:[#allocation2] sm:$0x1] 0.0
        $region40: #{tpu_custom_call.1} parent=27 // pred_fallthru
          _
        %v278 = vld [vmem:[%s219] sm:$0xff]
        %v279 = vld [vmem:[%s219 + $0x8] sm:$0xff]
        %v280 = vld [vmem:[%s219 + $0x10] sm:$0xff]
        %v281 = vld [vmem:[%s219 + $0x18] sm:$0xff]
        %v282 = vld [vmem:[%s229] sm:$0xff]
        %v283 = vld [vmem:[%s229 + $0x8] sm:$0xff]
        %v284 = vld [vmem:[%s229 + $0x10] sm:$0xff]
        %v285 = vld [vmem:[%s229 + $0x18] sm:$0xff]
        %v286 = vsub.f32 %v278, %v282
        %v287 = vsub.f32 %v279, %v283
        %v288 = vsub.f32 %v280, %v284
        %v289 = vsub.f32 %v281, %v285
        %v290 = vmul.f32 %v286, %v286
        %v291 = vmul.f32 %v287, %v287
        %v292 = vmul.f32 %v288, %v288
        %v293 = vmul.f32 %v289, %v289
        %s294 = smul.u32 %s26, 2
        %s295 = sadd.s32 %s294, %s27
        %s296 = smul.u32 %s295, 32
        %v297 = vlaneseq
        %v298 = vshrl.u32 %v297, 7
        %v299 = vadd.s32 %v298, 8
        %v300 = vadd.s32 %v298, 16
        %v301 = vadd.s32 %v298, 24
        %v302 = vstv %s296
        %v303 = vadd.s32 %v302, %v298
        %v304 = vadd.s32 %v302, %v299
        %v305 = vadd.s32 %v302, %v300
        %v306 = vadd.s32 %v302, %v301
        %vm307 = vcmp.lt.s32.totalorder %v303, 66
        %vm308 = vcmp.lt.s32.totalorder %v304, 66
        %vm309 = vcmp.lt.s32.totalorder %v305, 66
        %vm310 = vcmp.lt.s32.totalorder %v306, 66
        %v311 = vsel %vm307, %v290, 0.0
        %v312 = vsel %vm308, %v291, 0.0
        %v313 = vsel %vm309, %v292, 0.0
        %v314 = vsel %vm310, %v293, 0.0
        %v315 = vld [vmem:[#allocation2] sm:$0x1]
        %v316 = vadd.f32 %v311, %v312
        %v317 = vadd.f32 %v316, %v313
        %v318 = vadd.f32 %v317, %v314
        %v319 = vrot.slane %v318, 4
        %v320 = vadd.f32 %v318, %v319
        %v321 = vrot.slane %v320, 2
        %v322 = vadd.f32 %v320, %v321
        %v323 = vrot.slane %v322, 1
        %v324 = vadd.f32 %v322, %v323
        %v325 = vadd.f32 %v315, %v324
        %326 = vst [vmem:[#allocation2] sm:$0x1] %v325
        %p327 = scmp.eq.s32.totalorder %s27, 1
        // Predicated region
        $region41: #{tpu_custom_call.1} parent=27 // pred_check
          %p328 = pneg %p327
        $region42: #{tpu_custom_call.1} parent=27 // pred_check_branch
          %330 = sbr.rel (%p328) target = $region44
        $region43: #{tpu_custom_call.1} parent=27 // pred_region
          %v331 = vld [vmem:[#allocation2] sm:$0x1]
          %332 = vst [vmem:[%s254] sm:$0x1] %v331
        $region44: #{tpu_custom_call.1} parent=27 // pred_fallthru
          _
        %s333 = sand.u32 %s110, 1
        %s334 = scalar_lea.sflag [#allocation5], %s333
        %s335 = sand.u32 %s110, 1
        %s336 = scalar_lea.vmem [#allocation8], %s335
        // Predicated region
        $region45: #{tpu_custom_call.1} parent=27 // pred_check
          %p337 = pneg %p120
        $region46: #{tpu_custom_call.1} parent=27 // pred_check_branch
          %339 = sbr.rel (%p337) target = $region48
        $region47: #{tpu_custom_call.1} parent=27 // pred_region
          %341 = vsyncadd %s334, 0
          %s342 = scalar_lea.hbm %s2, %s26
          %s344 = sshll.u32 %s336, 4
          %s345 = int_to_ptr.vmem [resolvable:$true] %s344
          %s346 = sshll.u32 %s342, 4
          %s347 = int_to_ptr.hbm [resolvable:$true] %s346
          %349 = dma.vmem_to_hbm [thread:$0]  %s345, 16, %s347, %s334
        $region48: #{tpu_custom_call.1} parent=27 // pred_fallthru
          _
      $region28: #{tpu_custom_call.1} parent=5 // pred_fallthru
        _
      %p350 = scmp.le.s32.totalorder 2, %s17
      // Predicated region
      $region49: #{tpu_custom_call.1} parent=5 // pred_check
        %p351 = pneg %p350
      $region50: #{tpu_custom_call.1} parent=5 // pred_check_branch
        %353 = sbr.rel (%p351) target = $region52
      $region51: #{tpu_custom_call.1} parent=5 // pred_region
        %s354 = ssub.s32 %s17, 2
        // Predicated region
        $region53: #{tpu_custom_call.1} parent=51 // pred_check
          %p355 = pneg %p126
        $region54: #{tpu_custom_call.1} parent=51 // pred_check_branch
          %357 = sbr.rel (%p355) target = $region56
        $region55: #{tpu_custom_call.1} parent=51 // pred_region
          %s358 = sand.u32 %s111, 1
          %s359 = scalar_lea.sflag [#allocation5], %s358
          %s360 = sand.u32 %s111, 1
          %s361 = scalar_lea.vmem [#allocation8], %s360
          %363 = dma.done %s359, 16
        $region56: #{tpu_custom_call.1} parent=51 // pred_fallthru
          _
      $region52: #{tpu_custom_call.1} parent=5 // pred_fallthru
        _
    $region6: #{tpu_custom_call.1} parent=1 // loop_footer
      %s21 = sadd.s32 1, %s17
    $region7: #{tpu_custom_call.1} parent=1 // loop_footer_branch
      %16 = sbr.rel target = $region3
    $region8: #{tpu_custom_call.1} parent=1 // loop_exit
      _
    %364 = vsyncpa [#allocation4], 1
    %s365 = scalar_lea.sflag [#allocation4], 1
    %366 = vsyncpa %s365, 1
    %367 = vsyncpa [#allocation7], 1
    %s368 = scalar_lea.sflag [#allocation7], 1
    %369 = vsyncpa %s368, 1
    %370 = vsyncpa [#allocation5], 1
    %s371 = scalar_lea.sflag [#allocation5], 1
    %372 = vsyncpa %s371, 1

</llo_original>
